<compile_context>
chip_gen: v6e
topology: v6e:2x2x1
jax: 0.10.0
libtpu: 0.0.40
codegen_flags: <defaults>
</compile_context>

<pallas_src>
import functools

import jax
import jax.numpy as jnp
from jax.experimental import pallas as pl
from jax.experimental.pallas import tpu as pltpu


def _round_up(n, m):
    return ((n + m - 1) // m) * m


def _mlp_kernel(x_ref, w1_ref, b1_ref, w2_ref, b2_ref, w3_ref, b3_ref,
                w4_ref, b4_ref, o_ref, *, mm_dtype):
    """Fused 4-layer MLP for one batch tile.

    x_ref : (tile_b, D) f32 (cast to mm_dtype in-kernel, no extra HBM pass)
    w*_ref: weights stored (in, out) in mm_dtype; w4 passed as a (1, 64) f32 row
    b*_ref: biases (1, out), f32
    o_ref : (1, 1, tile_b) f32  lane-dense output slab for this tile
    """
    # Layer 1: (tile_b, D) @ (D, 256); cast LHS to the matmul dtype here
    # instead of in the wrapper (saves a full read+write pass over x in HBM).
    x = x_ref[...].astype(mm_dtype)
    h = jnp.dot(x, w1_ref[...], preferred_element_type=jnp.float32)
    h = jnp.maximum(h + b1_ref[...], 0.0)
    # Layer 2: (tile_b, 256) @ (256, 128)
    h = jnp.dot(h.astype(mm_dtype), w2_ref[...],
                preferred_element_type=jnp.float32)
    h = jnp.maximum(h + b2_ref[...], 0.0)
    # Layer 3: (tile_b, 128) @ (128, 64)
    h = jnp.dot(h.astype(mm_dtype), w3_ref[...],
                preferred_element_type=jnp.float32)
    h = jnp.maximum(h + b3_ref[...], 0.0)
    # Layer 4 (64 -> 1): VPU multiply + XLU lane reduction instead of an N=1
    # MXU matmul; result emitted as a lane-dense (1, tile_b) row.
    out = jnp.sum(h * w4_ref[...], axis=-1)          # (tile_b,)
    out = out[None, :] + b4_ref[...]                 # (1, tile_b), f32 bias
    o_ref[...] = out[None].astype(o_ref.dtype)       # (1, 1, tile_b)


def _resident_spec(arr):
    """Constant-index-map operand: fetched once, resident in VMEM.

    Single-buffered (pl.Buffered(1)) -- a replicated operand needs no double
    buffer; falls back to the default if the kwarg is unsupported.
    """
    ndim = arr.ndim
    index_map = lambda i: (0,) * ndim
    try:
        return pl.BlockSpec(arr.shape, index_map, pipeline_mode=pl.Buffered(1))
    except (TypeError, AttributeError):
        return pl.BlockSpec(arr.shape, index_map)


def bike_sharing_fcnet_forward(x, params, *, tile_b=2048, use_bf16=True):
    """4-layer MLP forward pass (ReLU chain then linear) via one Pallas kernel.

    Args:
      x: (B, input_dim) float32.
      params: dict with w1..w4 stored (in, out) and b1..b4 stored (1, out).
      tile_b: requested batch tile; rounded to a multiple of 128 and clamped
        to [128, 4096] (VMEM-safe on v5e/v6e/v7x).
      use_bf16: run matmul operands in bf16 (f32 accumulation / bias / ReLU).
        Set False to keep layer-1 inputs at full f32 precision.
    Returns:
      (B, 1) float32.
    """
    B, D = x.shape
    w1, b1 = params["w1"], params["b1"]
    w2, b2 = params["w2"], params["b2"]
    w3, b3 = params["w3"], params["b3"]
    w4, b4 = params["w4"], params["b4"]

    # --- Batch tiling --------------------------------------------------------
    # Multiple of 128 only; default 2048 keeps per-step compute well above the
    # ~0.35 us grid-step overhead while staying ~10 MiB of VMEM.  Cap at 4096
    # so the v7x 64 MiB physical / 32 MiB default scoped VMEM budget holds.
    tile_b = int(max(128, min(tile_b, 4096)))
    tile_b = min(tile_b, _round_up(B, 128))
    tile_b = _round_up(tile_b, 128)
    # v7x has two TensorCores: keep at least 2 grid steps for large batches so
    # the "parallel" axis can shard across them (harmless on 1-TC chips).
    if B >= 1024:
        tile_b = min(tile_b, _round_up(pl.cdiv(B, 2), 128))
    num_tiles = pl.cdiv(B, tile_b)

    # Only the tiny weights are cast in the wrapper; x stays f32 in HBM and is
    # cast (if requested) inside the kernel.  No feature / batch padding: the
    # boundary x block may be partially valid; its rows are independent and the
    # tail is sliced off below.
    mm_dtype = jnp.bfloat16 if use_bf16 else jnp.float32
    w1 = w1.astype(mm_dtype)
    w2 = w2.astype(mm_dtype)
    w3 = w3.astype(mm_dtype)
    w4_row = w4.reshape(1, -1).astype(jnp.float32)   # (1, 64), stays f32 (VPU)

    flops = 2 * B * (D * 256 + 256 * 128 + 128 * 64 + 64)
    bytes_accessed = (
        x.size * x.dtype.itemsize
        + sum(a.size * a.dtype.itemsize
              for a in (w1, b1, w2, b2, w3, b3, w4_row, b4))
        + num_tiles * tile_b * 4)

    kernel = functools.partial(_mlp_kernel, mm_dtype=mm_dtype)

    out = pl.pallas_call(
        kernel,
        out_shape=jax.ShapeDtypeStruct((num_tiles, 1, tile_b), jnp.float32),
        grid_spec=pltpu.PrefetchScalarGridSpec(
            num_scalar_prefetch=0,
            grid=(num_tiles,),
            in_specs=[
                # Streaming x tile; last block dim == full array dim (legal
                # even when D < 128), double-buffered by the pipeline.
                pl.BlockSpec((tile_b, D), lambda i: (i, 0)),
                _resident_spec(w1), _resident_spec(b1),
                _resident_spec(w2), _resident_spec(b2),
                _resident_spec(w3), _resident_spec(b3),
                _resident_spec(w4_row), _resident_spec(b4),
            ],
            out_specs=pl.BlockSpec((1, 1, tile_b), lambda i: (i, 0, 0)),
        ),
        compiler_params=pltpu.CompilerParams(
            dimension_semantics=("parallel",)),
        cost_estimate=pl.CostEstimate(
            flops=flops, transcendentals=0, bytes_accessed=bytes_accessed),
    )(x, w1, b1, w2, b2, w3, b3, w4_row, b4)

    # Lane-dense (num_tiles, 1, tile_b) slab -> (B, 1): free layout plumbing;
    # garbage rows from a partial final tile are discarded by the [:B] slice.
    return out.reshape(num_tiles * tile_b)[:B].reshape(B, 1)


def init_params(key, input_dim):
    """Init mimicking PyTorch nn.Linear default (uniform +/- 1/sqrt(fan_in)).

    Weights stored transposed as (in_features, out_features); biases (1, out).
    """
    dims = [(input_dim, 256), (256, 128), (128, 64), (64, 1)]
    params = {}
    for idx, (fan_in, fan_out) in enumerate(dims, start=1):
        key, kw, kb = jax.random.split(key, 3)
        bound = 1.0 / jnp.sqrt(jnp.float32(fan_in))
        params[f"w{idx}"] = jax.random.uniform(
            kw, (fan_in, fan_out), jnp.float32, -bound, bound)
        params[f"b{idx}"] = jax.random.uniform(
            kb, (1, fan_out), jnp.float32, -bound, bound)
    return params


def _reference_forward(x, params):
    h = jnp.maximum(x @ params["w1"] + params["b1"], 0.0)
    h = jnp.maximum(h @ params["w2"] + params["b2"], 0.0)
    h = jnp.maximum(h @ params["w3"] + params["b3"], 0.0)
    return h @ params["w4"] + params["b4"]


if __name__ == "__main__":
    key = jax.random.PRNGKey(0)
    # hour.csv after custom_transformations: 12 raw columns -> 118 features.
    # batch=300 deliberately exercises the no-pad partial-boundary-tile path.
    batch, input_dim = 300, 118

    key, kx, kp = jax.random.split(key, 3)
    x = jax.random.normal(kx, (batch, input_dim), jnp.float32)
    params = init_params(kp, input_dim)

    ref = _reference_forward(x, params)

    # f32 path, tiny tile -> multi-step grid + partial last tile: tight check.
    fwd_f32 = jax.jit(functools.partial(
        bike_sharing_fcnet_forward, tile_b=128, use_bf16=False))
    out_f32 = jax.block_until_ready(fwd_f32(x, params))
    assert out_f32.shape == (batch, 1)
    assert jnp.allclose(out_f32, ref, atol=1e-3, rtol=1e-3), "f32 mismatch"

    # Default path: bf16 MXU operands (cast in-kernel), f32 accumulate/bias.
    fwd_bf16 = jax.jit(bike_sharing_fcnet_forward)
    out_bf16 = jax.block_until_ready(fwd_bf16(x, params))
    assert out_bf16.shape == (batch, 1)
    assert jnp.allclose(out_bf16, ref, atol=5e-2, rtol=5e-2), "bf16 mismatch"

    print("KERNEL_OK")
</pallas_src>

<mosaic_0001>
module attributes {stable_mosaic.version = 11 : i64} {
  func.func @_mlp_kernel(%arg0: i32, %arg1: memref<128x118xf32, #tpu.memory_space<vmem>>, %arg2: memref<118x256xf32, #tpu.memory_space<vmem>>, %arg3: memref<1x256xf32, #tpu.memory_space<vmem>>, %arg4: memref<256x128xf32, #tpu.memory_space<vmem>>, %arg5: memref<1x128xf32, #tpu.memory_space<vmem>>, %arg6: memref<128x64xf32, #tpu.memory_space<vmem>>, %arg7: memref<1x64xf32, #tpu.memory_space<vmem>>, %arg8: memref<1x64xf32, #tpu.memory_space<vmem>>, %arg9: memref<1x1xf32, #tpu.memory_space<vmem>>, %arg10: memref<1x1x128xf32, #tpu.memory_space<vmem>>) attributes {dimension_semantics = [#tpu.dimension_semantics<parallel>], iteration_bounds = array<i64: 3>, scalar_prefetch = 0 : i64, scratch_operands = 0 : i64, tpu.core_type = #tpu.core_type<tc>, window_params = [{transform_indices = @transform_0, window_bounds = array<i64: 128, 118>}, {pipeline_mode = #tpu.pipeline_mode<synchronous>, transform_indices = @transform_1, window_bounds = array<i64: 118, 256>}, {pipeline_mode = #tpu.pipeline_mode<synchronous>, transform_indices = @transform_2, window_bounds = array<i64: 1, 256>}, {pipeline_mode = #tpu.pipeline_mode<synchronous>, transform_indices = @transform_3, window_bounds = array<i64: 256, 128>}, {pipeline_mode = #tpu.pipeline_mode<synchronous>, transform_indices = @transform_4, window_bounds = array<i64: 1, 128>}, {pipeline_mode = #tpu.pipeline_mode<synchronous>, transform_indices = @transform_5, window_bounds = array<i64: 128, 64>}, {pipeline_mode = #tpu.pipeline_mode<synchronous>, transform_indices = @transform_6, window_bounds = array<i64: 1, 64>}, {pipeline_mode = #tpu.pipeline_mode<synchronous>, transform_indices = @transform_7, window_bounds = array<i64: 1, 64>}, {pipeline_mode = #tpu.pipeline_mode<synchronous>, transform_indices = @transform_8, window_bounds = array<i64: 1, 1>}, {transform_indices = @transform_9, window_bounds = array<i64: 1, 1, 128>}]} {
    %c0 = arith.constant 0 : index
    %c0_0 = arith.constant 0 : index
    %0 = vector.load %arg1[%c0, %c0_0] : memref<128x118xf32, #tpu.memory_space<vmem>>, vector<128x118xf32>
    %c0_1 = arith.constant 0 : index
    %c0_2 = arith.constant 0 : index
    %1 = vector.load %arg2[%c0_1, %c0_2] : memref<118x256xf32, #tpu.memory_space<vmem>>, vector<118x256xf32>
    %cst = arith.constant dense<0.000000e+00> : vector<128x256xf32>
    %2 = tpu.matmul %0, %1, %cst {dimension_numbers = #tpu.dot_dimension_numbers<[1], [0], [0], [1], [0, 0, 1, 1], [], []>} : vector<128x118xf32>, vector<118x256xf32>, vector<128x256xf32> -> vector<128x256xf32>
    %c0_3 = arith.constant 0 : index
    %c0_4 = arith.constant 0 : index
    %3 = vector.load %arg3[%c0_3, %c0_4] : memref<1x256xf32, #tpu.memory_space<vmem>>, vector<1x256xf32>
    %4 = vector.broadcast %3 : vector<1x256xf32> to vector<128x256xf32>
    %5 = arith.addf %2, %4 : vector<128x256xf32>
    %cst_5 = arith.constant 0.000000e+00 : f32
    %6 = vector.broadcast %cst_5 : f32 to vector<128x256xf32>
    %7 = arith.maximumf %5, %6 : vector<128x256xf32>
    %c0_6 = arith.constant 0 : index
    %c0_7 = arith.constant 0 : index
    %8 = vector.load %arg4[%c0_6, %c0_7] : memref<256x128xf32, #tpu.memory_space<vmem>>, vector<256x128xf32>
    %cst_8 = arith.constant dense<0.000000e+00> : vector<128x128xf32>
    %9 = tpu.matmul %7, %8, %cst_8 {dimension_numbers = #tpu.dot_dimension_numbers<[1], [0], [0], [1], [0, 0, 1, 1], [], []>} : vector<128x256xf32>, vector<256x128xf32>, vector<128x128xf32> -> vector<128x128xf32>
    %c0_9 = arith.constant 0 : index
    %c0_10 = arith.constant 0 : index
    %10 = vector.load %arg5[%c0_9, %c0_10] : memref<1x128xf32, #tpu.memory_space<vmem>>, vector<1x128xf32>
    %11 = vector.broadcast %10 : vector<1x128xf32> to vector<128x128xf32>
    %12 = arith.addf %9, %11 : vector<128x128xf32>
    %cst_11 = arith.constant 0.000000e+00 : f32
    %13 = vector.broadcast %cst_11 : f32 to vector<128x128xf32>
    %14 = arith.maximumf %12, %13 : vector<128x128xf32>
    %c0_12 = arith.constant 0 : index
    %c0_13 = arith.constant 0 : index
    %15 = vector.load %arg6[%c0_12, %c0_13] : memref<128x64xf32, #tpu.memory_space<vmem>>, vector<128x64xf32>
    %cst_14 = arith.constant dense<0.000000e+00> : vector<128x64xf32>
    %16 = tpu.matmul %14, %15, %cst_14 {dimension_numbers = #tpu.dot_dimension_numbers<[1], [0], [0], [1], [0, 0, 1, 1], [], []>} : vector<128x128xf32>, vector<128x64xf32>, vector<128x64xf32> -> vector<128x64xf32>
    %c0_15 = arith.constant 0 : index
    %c0_16 = arith.constant 0 : index
    %17 = vector.load %arg7[%c0_15, %c0_16] : memref<1x64xf32, #tpu.memory_space<vmem>>, vector<1x64xf32>
    %18 = vector.broadcast %17 : vector<1x64xf32> to vector<128x64xf32>
    %19 = arith.addf %16, %18 : vector<128x64xf32>
    %cst_17 = arith.constant 0.000000e+00 : f32
    %20 = vector.broadcast %cst_17 : f32 to vector<128x64xf32>
    %21 = arith.maximumf %19, %20 : vector<128x64xf32>
    %c0_18 = arith.constant 0 : index
    %c0_19 = arith.constant 0 : index
    %22 = vector.load %arg8[%c0_18, %c0_19] : memref<1x64xf32, #tpu.memory_space<vmem>>, vector<1x64xf32>
    %23 = vector.broadcast %22 : vector<1x64xf32> to vector<128x64xf32>
    %24 = arith.mulf %21, %23 : vector<128x64xf32>
    %cst_20 = arith.constant dense<0.000000e+00> : vector<128xf32>
    %25 = vector.multi_reduction <add>, %24, %cst_20 [1] : vector<128x64xf32> to vector<128xf32>
    %26 = vector.shape_cast %25 : vector<128xf32> to vector<1x128xf32>
    %c0_21 = arith.constant 0 : index
    %c0_22 = arith.constant 0 : index
    %27 = vector.load %arg9[%c0_21, %c0_22] : memref<1x1xf32, #tpu.memory_space<vmem>>, vector<1x1xf32>
    %28 = vector.broadcast %27 : vector<1x1xf32> to vector<1x128xf32>
    %29 = arith.addf %26, %28 : vector<1x128xf32>
    %30 = vector.shape_cast %29 : vector<1x128xf32> to vector<1x1x128xf32>
    %c0_23 = arith.constant 0 : index
    %c0_24 = arith.constant 0 : index
    %c0_25 = arith.constant 0 : index
    %31 = vector.load %arg10[%c0_23, %c0_24, %c0_25] : memref<1x1x128xf32, #tpu.memory_space<vmem>>, vector<1x1x128xf32>
    tpu.vector_store %arg10[%c0_23, %c0_24, %c0_25], %30 {strides = array<i32>} : memref<1x1x128xf32, #tpu.memory_space<vmem>>, vector<1x1x128xf32>,
    return
  }
  func.func @transform_0(%arg0: i32) -> (i32, i32) {
    %c0_i32 = arith.constant 0 : i32
    %c0_i32_0 = arith.constant 0 : i32
    return %arg0, %c0_i32 : i32, i32
  }
  func.func @transform_1(%arg0: i32) -> (i32, i32) {
    %c0_i32 = arith.constant 0 : i32
    %c0_i32_0 = arith.constant 0 : i32
    %c0_i32_1 = arith.constant 0 : i32
    return %c0_i32, %c0_i32_0 : i32, i32
  }
  func.func @transform_2(%arg0: i32) -> (i32, i32) {
    %c0_i32 = arith.constant 0 : i32
    %c0_i32_0 = arith.constant 0 : i32
    %c0_i32_1 = arith.constant 0 : i32
    return %c0_i32, %c0_i32_0 : i32, i32
  }
  func.func @transform_3(%arg0: i32) -> (i32, i32) {
    %c0_i32 = arith.constant 0 : i32
    %c0_i32_0 = arith.constant 0 : i32
    %c0_i32_1 = arith.constant 0 : i32
    return %c0_i32, %c0_i32_0 : i32, i32
  }
  func.func @transform_4(%arg0: i32) -> (i32, i32) {
    %c0_i32 = arith.constant 0 : i32
    %c0_i32_0 = arith.constant 0 : i32
    %c0_i32_1 = arith.constant 0 : i32
    return %c0_i32, %c0_i32_0 : i32, i32
  }
  func.func @transform_5(%arg0: i32) -> (i32, i32) {
    %c0_i32 = arith.constant 0 : i32
    %c0_i32_0 = arith.constant 0 : i32
    %c0_i32_1 = arith.constant 0 : i32
    return %c0_i32, %c0_i32_0 : i32, i32
  }
  func.func @transform_6(%arg0: i32) -> (i32, i32) {
    %c0_i32 = arith.constant 0 : i32
    %c0_i32_0 = arith.constant 0 : i32
    %c0_i32_1 = arith.constant 0 : i32
    return %c0_i32, %c0_i32_0 : i32, i32
  }
  func.func @transform_7(%arg0: i32) -> (i32, i32) {
    %c0_i32 = arith.constant 0 : i32
    %c0_i32_0 = arith.constant 0 : i32
    %c0_i32_1 = arith.constant 0 : i32
    return %c0_i32, %c0_i32_0 : i32, i32
  }
  func.func @transform_8(%arg0: i32) -> (i32, i32) {
    %c0_i32 = arith.constant 0 : i32
    %c0_i32_0 = arith.constant 0 : i32
    %c0_i32_1 = arith.constant 0 : i32
    return %c0_i32, %c0_i32_0 : i32, i32
  }
  func.func @transform_9(%arg0: i32) -> (i32, i32, i32) {
    %c0_i32 = arith.constant 0 : i32
    %c0_i32_0 = arith.constant 0 : i32
    %c0_i32_1 = arith.constant 0 : i32
    return %arg0, %c0_i32, %c0_i32_0 : i32, i32, i32
  }
}

</mosaic_0001>

<llo_original>
// kernel: bike_sharing_fcnet_forward.1
$region0: #{bike_sharing_fcnet_forward.1}
  #allocation0 [shape = 'u32[]', space=smem, size = 0x4, offset = 0x4, fixed_abs, tag = 'smem constant byte address 0x4 - core index']
  #allocation1 [shape = 'u32[144,128]{1,0:T(1,128)}', space=vmem, size = 0x12000, scoped, tag = 'internal scratch']
  #allocation2 [shape = 'f32[1,1]{1,0:T(1,128)S(1)}', space=vmem, size = 0x200, scoped, tag = 'scoped memory for bike_sharing_fcnet_forward.1']
  %s0 = inlined_call_operand.hbm [shape: f32[300,118], index: 0, kind: input, shape index: {}]
  %s1 = inlined_call_operand.hbm [shape: f32[118,256], index: 1, kind: input, shape index: {}]
  %s2 = inlined_call_operand.vmem [shape: f32[1,256], index: 2, kind: input, shape index: {}]
  %s3 = inlined_call_operand.hbm [shape: f32[256,128], index: 3, kind: input, shape index: {}]
  %s4 = inlined_call_operand.vmem [shape: f32[1,128], index: 4, kind: input, shape index: {}]
  %s5 = inlined_call_operand.vmem [shape: f32[128,64], index: 5, kind: input, shape index: {}]
  %s6 = inlined_call_operand.vmem [shape: f32[1,64], index: 6, kind: input, shape index: {}]
  %s7 = inlined_call_operand.vmem [shape: f32[1,64], index: 7, kind: input, shape index: {}]
  %s8 = inlined_call_operand.<no memory space> [shape: f32[1,1], index: 8, kind: input, shape index: {}]
  %s9 = inlined_call_operand.vmem [shape: f32[3,1,128], index: 9, kind: output, shape index: {}]
  %s10 = sld [smem:[#allocation0]]
  $region81: #{bike_sharing_fcnet_forward.1} parent=0
    _
  %s12 = ssub.s32 1, %s10
  %s13 = scalar_select 0, %s12, %s10
  %v14 = vstv %s8
  %15 = vst [vmem:[#allocation2] sm:$0x1] %v14
  $region1: #{bike_sharing_fcnet_forward.1} parent=0
    #allocation3 [shape = 'u8[131072]{0}', space=vmem, size = 0x20000, scoped, tag = 'input window, operand 0']
    #allocation4 [shape = 's32[2]{0}', space=sflag, size = 0x8, scoped, tag = 'scoped memory for bike_sharing_fcnet_forward.1']
    #allocation5 [shape = 'u8[122880]{0}', space=vmem, size = 0x1e000, scoped, tag = 'input window, operand 1, single buffered']
    #allocation6 [shape = 's32[1]{0}', space=sflag, size = 0x4, scoped, tag = 'scoped memory for bike_sharing_fcnet_forward.1']
    #allocation7 [shape = 'u8[131072]{0}', space=vmem, size = 0x20000, scoped, tag = 'input window, operand 3, single buffered']
    %16 = vsyncpa [#allocation4], 0
    %s17 = scalar_lea.sflag [#allocation4], 1
    %18 = vsyncpa %s17, 0
    %19 = vsyncpa [#allocation6], 0
    loop: start=0, step=1, limit=5
    $region2: #{bike_sharing_fcnet_forward.1} parent=1 // loop_pre_header
      _
    $region3: #{bike_sharing_fcnet_forward.1} parent=1 // loop_header
      %s21 = sphi 0, %s25
      %p22 = scmp.ge.s32.totalorder %s21, 5
      %s31 = sphi 0, %s33
      %s34 = sphi 0, %s31
      %s35 = sphi 0, %s34
      %s51 = sphi 0, %s35
      %s55 = sphi 0, %s55
      %s57 = sphi 0, %s55
      %s58 = sphi 0, %s57
      %s72 = sphi 0, %s58
      %s76 = sphi 0, %s76
      %s78 = sphi 0, %s76
      %s79 = sphi 0, %s78
      %s93 = sphi 0, %s79
      %s97 = sphi 0, %s97
      %s99 = sphi 0, %s97
      %s100 = sphi 0, %s99
      %s114 = sphi 0, %s100
      %s118 = sphi 0, %s118
      %s120 = sphi 0, %s118
      %s121 = sphi 0, %s120
      %s135 = sphi 0, %s121
      %s139 = sphi 0, %s139
      %s141 = sphi 0, %s139
      %s142 = sphi 0, %s141
      %s156 = sphi 0, %s142
      %s160 = sphi 0, %s160
      %s162 = sphi 0, %s160
      %s163 = sphi 0, %s162
      %s177 = sphi 0, %s163
      %s181 = sphi 0, %s181
      %s183 = sphi 0, %s181
      %s184 = sphi 0, %s183
      %s198 = sphi 0, %s184
      %s202 = sphi 0, %s202
      %s204 = sphi 0, %s202
      %s205 = sphi 0, %s204
      %s219 = sphi 0, %s205
      %s225 = sphi 0, %s227
      %s228 = sphi 0, %s225
      %s229 = sphi 0, %s228
      %s245 = sphi 0, %s229
    $region4: #{bike_sharing_fcnet_forward.1} parent=1 // loop_header_branch
      %24 = sbr.rel (%p22) target = $region8
    $region5: #{bike_sharing_fcnet_forward.1} parent=1 // loop_body
      %s26 = ssub.s32 %s21, 1
      %s27 = ssub.s32 %s21, 2
      %s28 = sadd.s32 %s21, 1
      %s29 = ssub.s32 %s21, %s28
      %p30 = scmp.eq.s32.totalorder %s29, 0
      %s32 = sadd.s32 %s31, 1
      %s33 = scalar_select %p30, %s31, %s32
      %p36 = pneg %p30
      %p37 = scmp.eq.s32.totalorder %s21, 2
      %p38 = por %p36, %p37
      %p39 = scmp.ne.s32.totalorder %s31, %s34
      %p40 = scmp.eq.s32.totalorder %s21, 0
      %p41 = por %p39, %p40
      %p42 = scmp.ne.s32.totalorder %s31, %s34
      %p43 = scmp.eq.s32.totalorder %s26, 2
      %p44 = por %p42, %p43
      %p45 = scmp.ne.s32.totalorder %s34, %s35
      %p46 = scmp.eq.s32.totalorder %s26, 0
      %p47 = por %p45, %p46
      %p48 = scmp.ne.s32.totalorder %s34, %s35
      %p49 = scmp.eq.s32.totalorder %s27, 2
      %p50 = por %p48, %p49
      %p52 = scmp.ne.s32.totalorder %s35, %s51
      %p53 = scmp.eq.s32.totalorder %s27, 0
      %p54 = por %p52, %p53
      %s56 = sadd.s32 %s55, 1
      %p59 = scmp.eq.s32.totalorder %s21, 2
      %p60 = scmp.ne.s32.totalorder %s55, %s57
      %p61 = scmp.eq.s32.totalorder %s21, 0
      %p62 = por %p60, %p61
      %p63 = scmp.ne.s32.totalorder %s55, %s57
      %p64 = scmp.eq.s32.totalorder %s26, 2
      %p65 = por %p63, %p64
      %p66 = scmp.ne.s32.totalorder %s57, %s58
      %p67 = scmp.eq.s32.totalorder %s26, 0
      %p68 = por %p66, %p67
      %p69 = scmp.ne.s32.totalorder %s57, %s58
      %p70 = scmp.eq.s32.totalorder %s27, 2
      %p71 = por %p69, %p70
      %p73 = scmp.ne.s32.totalorder %s58, %s72
      %p74 = scmp.eq.s32.totalorder %s27, 0
      %p75 = por %p73, %p74
      %s77 = sadd.s32 %s76, 1
      %p80 = scmp.eq.s32.totalorder %s21, 2
      %p81 = scmp.ne.s32.totalorder %s76, %s78
      %p82 = scmp.eq.s32.totalorder %s21, 0
      %p83 = por %p81, %p82
      %p84 = scmp.ne.s32.totalorder %s76, %s78
      %p85 = scmp.eq.s32.totalorder %s26, 2
      %p86 = por %p84, %p85
      %p87 = scmp.ne.s32.totalorder %s78, %s79
      %p88 = scmp.eq.s32.totalorder %s26, 0
      %p89 = por %p87, %p88
      %p90 = scmp.ne.s32.totalorder %s78, %s79
      %p91 = scmp.eq.s32.totalorder %s27, 2
      %p92 = por %p90, %p91
      %p94 = scmp.ne.s32.totalorder %s79, %s93
      %p95 = scmp.eq.s32.totalorder %s27, 0
      %p96 = por %p94, %p95
      %s98 = sadd.s32 %s97, 1
      %p101 = scmp.eq.s32.totalorder %s21, 2
      %p102 = scmp.ne.s32.totalorder %s97, %s99
      %p103 = scmp.eq.s32.totalorder %s21, 0
      %p104 = por %p102, %p103
      %p105 = scmp.ne.s32.totalorder %s97, %s99
      %p106 = scmp.eq.s32.totalorder %s26, 2
      %p107 = por %p105, %p106
      %p108 = scmp.ne.s32.totalorder %s99, %s100
      %p109 = scmp.eq.s32.totalorder %s26, 0
      %p110 = por %p108, %p109
      %p111 = scmp.ne.s32.totalorder %s99, %s100
      %p112 = scmp.eq.s32.totalorder %s27, 2
      %p113 = por %p111, %p112
      %p115 = scmp.ne.s32.totalorder %s100, %s114
      %p116 = scmp.eq.s32.totalorder %s27, 0
      %p117 = por %p115, %p116
      %s119 = sadd.s32 %s118, 1
      %p122 = scmp.eq.s32.totalorder %s21, 2
      %p123 = scmp.ne.s32.totalorder %s118, %s120
      %p124 = scmp.eq.s32.totalorder %s21, 0
      %p125 = por %p123, %p124
      %p126 = scmp.ne.s32.totalorder %s118, %s120
      %p127 = scmp.eq.s32.totalorder %s26, 2
      %p128 = por %p126, %p127
      %p129 = scmp.ne.s32.totalorder %s120, %s121
      %p130 = scmp.eq.s32.totalorder %s26, 0
      %p131 = por %p129, %p130
      %p132 = scmp.ne.s32.totalorder %s120, %s121
      %p133 = scmp.eq.s32.totalorder %s27, 2
      %p134 = por %p132, %p133
      %p136 = scmp.ne.s32.totalorder %s121, %s135
      %p137 = scmp.eq.s32.totalorder %s27, 0
      %p138 = por %p136, %p137
      %s140 = sadd.s32 %s139, 1
      %p143 = scmp.eq.s32.totalorder %s21, 2
      %p144 = scmp.ne.s32.totalorder %s139, %s141
      %p145 = scmp.eq.s32.totalorder %s21, 0
      %p146 = por %p144, %p145
      %p147 = scmp.ne.s32.totalorder %s139, %s141
      %p148 = scmp.eq.s32.totalorder %s26, 2
      %p149 = por %p147, %p148
      %p150 = scmp.ne.s32.totalorder %s141, %s142
      %p151 = scmp.eq.s32.totalorder %s26, 0
      %p152 = por %p150, %p151
      %p153 = scmp.ne.s32.totalorder %s141, %s142
      %p154 = scmp.eq.s32.totalorder %s27, 2
      %p155 = por %p153, %p154
      %p157 = scmp.ne.s32.totalorder %s142, %s156
      %p158 = scmp.eq.s32.totalorder %s27, 0
      %p159 = por %p157, %p158
      %s161 = sadd.s32 %s160, 1
      %p164 = scmp.eq.s32.totalorder %s21, 2
      %p165 = scmp.ne.s32.totalorder %s160, %s162
      %p166 = scmp.eq.s32.totalorder %s21, 0
      %p167 = por %p165, %p166
      %p168 = scmp.ne.s32.totalorder %s160, %s162
      %p169 = scmp.eq.s32.totalorder %s26, 2
      %p170 = por %p168, %p169
      %p171 = scmp.ne.s32.totalorder %s162, %s163
      %p172 = scmp.eq.s32.totalorder %s26, 0
      %p173 = por %p171, %p172
      %p174 = scmp.ne.s32.totalorder %s162, %s163
      %p175 = scmp.eq.s32.totalorder %s27, 2
      %p176 = por %p174, %p175
      %p178 = scmp.ne.s32.totalorder %s163, %s177
      %p179 = scmp.eq.s32.totalorder %s27, 0
      %p180 = por %p178, %p179
      %s182 = sadd.s32 %s181, 1
      %p185 = scmp.eq.s32.totalorder %s21, 2
      %p186 = scmp.ne.s32.totalorder %s181, %s183
      %p187 = scmp.eq.s32.totalorder %s21, 0
      %p188 = por %p186, %p187
      %p189 = scmp.ne.s32.totalorder %s181, %s183
      %p190 = scmp.eq.s32.totalorder %s26, 2
      %p191 = por %p189, %p190
      %p192 = scmp.ne.s32.totalorder %s183, %s184
      %p193 = scmp.eq.s32.totalorder %s26, 0
      %p194 = por %p192, %p193
      %p195 = scmp.ne.s32.totalorder %s183, %s184
      %p196 = scmp.eq.s32.totalorder %s27, 2
      %p197 = por %p195, %p196
      %p199 = scmp.ne.s32.totalorder %s184, %s198
      %p200 = scmp.eq.s32.totalorder %s27, 0
      %p201 = por %p199, %p200
      %s203 = sadd.s32 %s202, 1
      %p206 = scmp.eq.s32.totalorder %s21, 2
      %p207 = scmp.ne.s32.totalorder %s202, %s204
      %p208 = scmp.eq.s32.totalorder %s21, 0
      %p209 = por %p207, %p208
      %p210 = scmp.ne.s32.totalorder %s202, %s204
      %p211 = scmp.eq.s32.totalorder %s26, 2
      %p212 = por %p210, %p211
      %p213 = scmp.ne.s32.totalorder %s204, %s205
      %p214 = scmp.eq.s32.totalorder %s26, 0
      %p215 = por %p213, %p214
      %p216 = scmp.ne.s32.totalorder %s204, %s205
      %p217 = scmp.eq.s32.totalorder %s27, 2
      %p218 = por %p216, %p217
      %p220 = scmp.ne.s32.totalorder %s205, %s219
      %p221 = scmp.eq.s32.totalorder %s27, 0
      %p222 = por %p220, %p221
      %s223 = ssub.s32 %s21, %s28
      %p224 = scmp.eq.s32.totalorder %s223, 0
      %s226 = sadd.s32 %s225, 1
      %s227 = scalar_select %p224, %s225, %s226
      %p230 = pneg %p224
      %p231 = scmp.eq.s32.totalorder %s21, 2
      %p232 = por %p230, %p231
      %p233 = scmp.ne.s32.totalorder %s225, %s228
      %p234 = scmp.eq.s32.totalorder %s21, 0
      %p235 = por %p233, %p234
      %p236 = scmp.ne.s32.totalorder %s225, %s228
      %p237 = scmp.eq.s32.totalorder %s26, 2
      %p238 = por %p236, %p237
      %p239 = scmp.ne.s32.totalorder %s228, %s229
      %p240 = scmp.eq.s32.totalorder %s26, 0
      %p241 = por %p239, %p240
      %p242 = scmp.ne.s32.totalorder %s228, %s229
      %p243 = scmp.eq.s32.totalorder %s27, 2
      %p244 = por %p242, %p243
      %p246 = scmp.ne.s32.totalorder %s229, %s245
      %p247 = scmp.eq.s32.totalorder %s27, 0
      %p248 = por %p246, %p247
      %p249 = scmp.le.s32.totalorder 1, %s21
      %p250 = scmp.lt.s32.totalorder %s21, 4
      %p251 = pnand %p249, %p250
      %p252 = pneg %p251
      // Predicated region
      $region9: #{bike_sharing_fcnet_forward.1} parent=5 // pred_check
        _
      $region10: #{bike_sharing_fcnet_forward.1} parent=5 // pred_check_branch
        %254 = sbr.rel (%p251) target = $region12
      $region11: #{bike_sharing_fcnet_forward.1} parent=5 // pred_region
        %s255 = ssub.s32 %s21, 1
        // Predicated region
        $region13: #{bike_sharing_fcnet_forward.1} parent=11 // pred_check
          %p256 = pneg %p68
        $region14: #{bike_sharing_fcnet_forward.1} parent=11 // pred_check_branch
          %258 = sbr.rel (%p256) target = $region16
        $region15: #{bike_sharing_fcnet_forward.1} parent=11 // pred_region
          %s260 = ssub.s32 3840, 3840
          %261 = vsyncadd [#allocation6], %s260
          %s262 = sshll.u32 [#allocation5], 4
          %s263 = int_to_ptr.vmem [resolvable:$true] %s262
          %268 = dma.hbm_to_vmem [thread:$0]  %s1, 3840, %s263, [#allocation6], 256, 256, 16
        $region16: #{bike_sharing_fcnet_forward.1} parent=11 // pred_fallthru
          _
        // Predicated region
        $region17: #{bike_sharing_fcnet_forward.1} parent=11 // pred_check
          %p269 = pneg %p89
        $region18: #{bike_sharing_fcnet_forward.1} parent=11 // pred_check_branch
          %271 = sbr.rel (%p269) target = $region20
        $region19: #{bike_sharing_fcnet_forward.1} parent=11 // pred_region
          _
        $region20: #{bike_sharing_fcnet_forward.1} parent=11 // pred_fallthru
          _
        // Predicated region
        $region21: #{bike_sharing_fcnet_forward.1} parent=11 // pred_check
          %p272 = pneg %p110
        $region22: #{bike_sharing_fcnet_forward.1} parent=11 // pred_check_branch
          %274 = sbr.rel (%p272) target = $region24
        $region23: #{bike_sharing_fcnet_forward.1} parent=11 // pred_region
          %s276 = ssub.s32 4096, 4096
          %277 = vsyncadd [#allocation6], %s276
          %s278 = sshll.u32 [#allocation7], 4
          %s279 = int_to_ptr.vmem [resolvable:$true] %s278
          %284 = dma.hbm_to_vmem [thread:$0]  %s3, 4096, %s279, [#allocation6], 128, 128, 8
        $region24: #{bike_sharing_fcnet_forward.1} parent=11 // pred_fallthru
          _
        // Predicated region
        $region25: #{bike_sharing_fcnet_forward.1} parent=11 // pred_check
          %p285 = pneg %p131
        $region26: #{bike_sharing_fcnet_forward.1} parent=11 // pred_check_branch
          %287 = sbr.rel (%p285) target = $region28
        $region27: #{bike_sharing_fcnet_forward.1} parent=11 // pred_region
          _
        $region28: #{bike_sharing_fcnet_forward.1} parent=11 // pred_fallthru
          _
        // Predicated region
        $region29: #{bike_sharing_fcnet_forward.1} parent=11 // pred_check
          %p288 = pneg %p152
        $region30: #{bike_sharing_fcnet_forward.1} parent=11 // pred_check_branch
          %290 = sbr.rel (%p288) target = $region32
        $region31: #{bike_sharing_fcnet_forward.1} parent=11 // pred_region
          _
        $region32: #{bike_sharing_fcnet_forward.1} parent=11 // pred_fallthru
          _
        // Predicated region
        $region33: #{bike_sharing_fcnet_forward.1} parent=11 // pred_check
          %p291 = pneg %p173
        $region34: #{bike_sharing_fcnet_forward.1} parent=11 // pred_check_branch
          %293 = sbr.rel (%p291) target = $region36
        $region35: #{bike_sharing_fcnet_forward.1} parent=11 // pred_region
          _
        $region36: #{bike_sharing_fcnet_forward.1} parent=11 // pred_fallthru
          _
        // Predicated region
        $region37: #{bike_sharing_fcnet_forward.1} parent=11 // pred_check
          %p294 = pneg %p194
        $region38: #{bike_sharing_fcnet_forward.1} parent=11 // pred_check_branch
          %296 = sbr.rel (%p294) target = $region40
        $region39: #{bike_sharing_fcnet_forward.1} parent=11 // pred_region
          _
        $region40: #{bike_sharing_fcnet_forward.1} parent=11 // pred_fallthru
          _
        // Predicated region
        $region41: #{bike_sharing_fcnet_forward.1} parent=11 // pred_check
          %p297 = pneg %p215
        $region42: #{bike_sharing_fcnet_forward.1} parent=11 // pred_check_branch
          %299 = sbr.rel (%p297) target = $region44
        $region43: #{bike_sharing_fcnet_forward.1} parent=11 // pred_region
          _
        $region44: #{bike_sharing_fcnet_forward.1} parent=11 // pred_fallthru
          _
      $region12: #{bike_sharing_fcnet_forward.1} parent=5 // pred_fallthru
        _
      %p300 = scmp.lt.s32.totalorder %s21, 3
      // Predicated region
      $region45: #{bike_sharing_fcnet_forward.1} parent=5 // pred_check
        %p301 = pneg %p300
      $region46: #{bike_sharing_fcnet_forward.1} parent=5 // pred_check_branch
        %303 = sbr.rel (%p301) target = $region48
      $region47: #{bike_sharing_fcnet_forward.1} parent=5 // pred_region
        // Predicated region
        $region49: #{bike_sharing_fcnet_forward.1} parent=47 // pred_check
          %p304 = pneg %p41
        $region50: #{bike_sharing_fcnet_forward.1} parent=47 // pred_check_branch
          %306 = sbr.rel (%p304) target = $region52
        $region51: #{bike_sharing_fcnet_forward.1} parent=47 // pred_region
          %s307 = sand.u32 %s31, 1
          %s308 = scalar_lea.sflag [#allocation4], %s307
          %s309 = sand.u32 %s31, 1
          %s310 = smul.addr %s309, 128
          %s311 = scalar_lea.vmem [#allocation3], %s310
          %s312 = smul.u32 16, %s21
          %s313 = ssub.s32 38, %s312
          %p314 = scmp.lt.s32.totalorder %s313, 16
          %s315 = scalar_select %p314, %s313, 16
          %s316 = smul.u32 128, %s315
          %s318 = ssub.s32 2048, %s316
          %319 = vsyncadd %s308, %s318
          %p320 = scmp.ne.s32.totalorder 0, %s316
          %s321 = smul.addr %s312, 128
          %s322 = scalar_lea.hbm %s0, %s321
          %s323 = smul.u32 8, %s315
          %s324 = sshll.u32 %s311, 4
          %s325 = int_to_ptr.vmem [resolvable:$true] %s324
          %s326 = sshll.u32 %s323, 4
          %330 = dma.hbm_to_vmem [thread:$0]  (%p320), %s322, %s326, %s325, %s308, 128, 128, 8
        $region52: #{bike_sharing_fcnet_forward.1} parent=47 // pred_fallthru
          _
      $region48: #{bike_sharing_fcnet_forward.1} parent=5 // pred_fallthru
        _
      %p331 = scmp.le.s32.totalorder 1, %s21
      %p332 = scmp.lt.s32.totalorder %s21, 4
      %p333 = pnand %p331, %p332
      %p334 = pneg %p333
      // Predicated region
      $region53: #{bike_sharing_fcnet_forward.1} parent=5 // pred_check
        _
      $region54: #{bike_sharing_fcnet_forward.1} parent=5 // pred_check_branch
        %336 = sbr.rel (%p333) target = $region56
      $region55: #{bike_sharing_fcnet_forward.1} parent=5 // pred_region
        %s337 = ssub.s32 %s21, 1
        %s338 = sand.u32 %s34, 1
        %s339 = scalar_lea.sflag [#allocation4], %s338
        %s340 = sand.u32 %s34, 1
        %s341 = smul.addr %s340, 128
        %s342 = scalar_lea.vmem [#allocation3], %s341
        // Predicated region
        $region57: #{bike_sharing_fcnet_forward.1} parent=55 // pred_check
          %p343 = pneg %p47
        $region58: #{bike_sharing_fcnet_forward.1} parent=55 // pred_check_branch
          %345 = sbr.rel (%p343) target = $region60
        $region59: #{bike_sharing_fcnet_forward.1} parent=55 // pred_region
          %346 = dma.done %s339, 2048
        $region60: #{bike_sharing_fcnet_forward.1} parent=55 // pred_fallthru
          _
        // Predicated region
        $region61: #{bike_sharing_fcnet_forward.1} parent=55 // pred_check
          %p347 = pneg %p68
        $region62: #{bike_sharing_fcnet_forward.1} parent=55 // pred_check_branch
          %349 = sbr.rel (%p347) target = $region64
        $region63: #{bike_sharing_fcnet_forward.1} parent=55 // pred_region
          %350 = dma.done [#allocation6], 3840
        $region64: #{bike_sharing_fcnet_forward.1} parent=55 // pred_fallthru
          _
        // Predicated region
        $region65: #{bike_sharing_fcnet_forward.1} parent=55 // pred_check
          %p351 = pneg %p110
        $region66: #{bike_sharing_fcnet_forward.1} parent=55 // pred_check_branch
          %353 = sbr.rel (%p351) target = $region68
        $region67: #{bike_sharing_fcnet_forward.1} parent=55 // pred_region
          %354 = dma.done [#allocation6], 4096
        $region68: #{bike_sharing_fcnet_forward.1} parent=55 // pred_fallthru
          _
        %s355 = sand.u32 %s34, 1
        %s356 = scalar_lea.sflag [#allocation4], %s355
        %s357 = sand.u32 %s34, 1
        %s358 = smul.addr %s357, 128
        %s359 = scalar_lea.vmem [#allocation3], %s358
        %p360 = pneg %p47
        %p361 = pneg %p44
        %p362 = pneg %p68
        %p363 = pneg %p65
        %p364 = pneg %p89
        %p365 = pneg %p86
        %p366 = pneg %p110
        %p367 = pneg %p107
        %p368 = pneg %p131
        %p369 = pneg %p128
        %p370 = pneg %p152
        %p371 = pneg %p149
        %p372 = pneg %p173
        %p373 = pneg %p170
        %p374 = pneg %p194
        %p375 = pneg %p191
        %p376 = pneg %p215
        %p377 = pneg %p212
        %p378 = pneg %p241
        %p379 = pneg %p238
        %p380 = scmp.lt.s32.totalorder %s26, 2
        %s381 = scalar_select %p380, %s26, 2
        %s382 = scalar_lea.vmem %s9, %s381
        %s383 = smul.u32 16, %s26
        %s384 = ssub.s32 38, %s383
        %p385 = scmp.lt.s32.totalorder %s384, 16
        %s386 = scalar_select %p385, %s384, 16
        %s387 = smul.u32 128, %s386
        %p388 = scmp.lt.s32.totalorder %s26, 2
        %s389 = scalar_select %p388, %s26, 2
        %s390 = scalar_lea.vmem %s9, %s389
        %v391 = vld [vmem:[%s342] sm:$0xff]
        %v392 = vld [vmem:[%s342 + $0x8] sm:$0xff]
        %v393 = vld [vmem:[%s342 + $0x10] sm:$0xff]
        %v394 = vld [vmem:[%s342 + $0x18] sm:$0xff]
        %v395 = vld [vmem:[%s342 + $0x20] sm:$0xff]
        %v396 = vld [vmem:[%s342 + $0x28] sm:$0xff]
        %v397 = vld [vmem:[%s342 + $0x30] sm:$0xff]
        %v398 = vld [vmem:[%s342 + $0x38] sm:$0xff]
        %v399 = vld [vmem:[%s342 + $0x40] sm:$0xff]
        %v400 = vld [vmem:[%s342 + $0x48] sm:$0xff]
        %v401 = vld [vmem:[%s342 + $0x50] sm:$0xff]
        %v402 = vld [vmem:[%s342 + $0x58] sm:$0xff]
        %v403 = vld [vmem:[%s342 + $0x60] sm:$0xff]
        %v404 = vld [vmem:[%s342 + $0x68] sm:$0xff]
        %v405 = vld [vmem:[%s342 + $0x70] sm:$0xff]
        %v406 = vld [vmem:[%s342 + $0x78] sm:$0xff]
        %v407 = vld [vmem:[#allocation5] sm:$0xff]
        %v408 = vld [vmem:[#allocation5 + $0x8] sm:$0xff]
        %v409 = vld [vmem:[#allocation5 + $0x10] sm:$0xff]
        %v410 = vld [vmem:[#allocation5 + $0x18] sm:$0xff]
        %v411 = vld [vmem:[#allocation5 + $0x20] sm:$0xff]
        %v412 = vld [vmem:[#allocation5 + $0x28] sm:$0xff]
        %v413 = vld [vmem:[#allocation5 + $0x30] sm:$0xff]
        %v414 = vld [vmem:[#allocation5 + $0x38] sm:$0xff]
        %v415 = vld [vmem:[#allocation5 + $0x40] sm:$0xff]
        %v416 = vld [vmem:[#allocation5 + $0x48] sm:$0xff]
        %v417 = vld [vmem:[#allocation5 + $0x50] sm:$0xff]
        %v418 = vld [vmem:[#allocation5 + $0x58] sm:$0xff]
        %v419 = vld [vmem:[#allocation5 + $0x60] sm:$0xff]
        %v420 = vld [vmem:[#allocation5 + $0x68] sm:$0xff]
        %v421 = vld [vmem:[#allocation5 + $0x70] sm:$0xff]
        %v422 = vld [vmem:[#allocation5 + $0x78] sm:$0xff]
        %v423 = vld [vmem:[#allocation5 + $0x80] sm:$0xff]
        %v424 = vld [vmem:[#allocation5 + $0x88] sm:$0xff]
        %v425 = vld [vmem:[#allocation5 + $0x90] sm:$0xff]
        %v426 = vld [vmem:[#allocation5 + $0x98] sm:$0xff]
        %v427 = vld [vmem:[#allocation5 + $0xa0] sm:$0xff]
        %v428 = vld [vmem:[#allocation5 + $0xa8] sm:$0xff]
        %v429 = vld [vmem:[#allocation5 + $0xb0] sm:$0xff]
        %v430 = vld [vmem:[#allocation5 + $0xb8] sm:$0xff]
        %v431 = vld [vmem:[#allocation5 + $0xc0] sm:$0xff]
        %v432 = vld [vmem:[#allocation5 + $0xc8] sm:$0xff]
        %v433 = vld [vmem:[#allocation5 + $0xd0] sm:$0xff]
        %v434 = vld [vmem:[#allocation5 + $0xd8] sm:$0xff]
        %v435 = vld [vmem:[#allocation5 + $0xe0] sm:$0x3f]
        %v436 = vld [vmem:[#allocation5 + $0xe8] sm:$0x3f]
        %v437 = vld [vmem:[%s2] sm:$0x3]
        %v439 = vlaneseq
        %v440 = vshrl.u32 %v439, 7
        %v441 = vsub.s32 0, %v440
        %v442 = vrot.slane %v437, %v441
        %v443 = vlaneseq
        %v444 = vshrl.u32 %v443, 7
        %v445 = vsub.s32 1, %v444
        %v446 = vrot.slane %v437, %v445
        %vm449 = vcmask 965632
        %v451 = vsel %vm449, %v391, 0
        %v454 = vsel %vm449, %v392, 0
        %v457 = vsel %vm449, %v393, 0
        %v460 = vsel %vm449, %v394, 0
        %v463 = vsel %vm449, %v395, 0
        %v466 = vsel %vm449, %v396, 0
        %v469 = vsel %vm449, %v397, 0
        %v472 = vsel %vm449, %v398, 0
        %v475 = vsel %vm449, %v399, 0
        %v478 = vsel %vm449, %v400, 0
        %v481 = vsel %vm449, %v401, 0
        %v484 = vsel %vm449, %v402, 0
        %v487 = vsel %vm449, %v403, 0
        %v490 = vsel %vm449, %v404, 0
        %v493 = vsel %vm449, %v405, 0
        %v496 = vsel %vm449, %v406, 0
        %vm498 = vcmask 1045504
        %v500 = vsel %vm498, %v435, 0
        %v503 = vsel %vm498, %v436, 0
        %505 = vmatprep.subr.mxu0 0.0
        %506 = vmatpush1.msra.mxu0 0.0
        %507 = vmatprep.subr.mxu0 %v503
        %508 = vmatpush1.msra.mxu0 %v500
        %509 = vmatprep.subr.mxu0 %v434
        %510 = vmatpush1.msra.mxu0 %v433
        %511 = vmatprep.subr.mxu0 %v432
        %512 = vmatpush1.msra.mxu0 %v431
        %513 = vmatprep.subr.mxu0 %v430
        %514 = vmatpush1.msra.mxu0 %v429
        %515 = vmatprep.subr.mxu0 %v428
        %516 = vmatpush1.msra.mxu0 %v427
        %517 = vmatprep.subr.mxu0 %v426
        %518 = vmatpush1.msra.mxu0 %v425
        %519 = vmatprep.subr.mxu0 %v424
        %520 = vmatpush1.msra.mxu0 %v423
        %521 = vmatprep.subr.mxu0 %v422
        %522 = vmatpush1.msra.mxu0 %v421
        %523 = vmatprep.subr.mxu0 %v420
        %524 = vmatpush1.msra.mxu0 %v419
        %525 = vmatprep.subr.mxu0 %v418
        %526 = vmatpush1.msra.mxu0 %v417
        %527 = vmatprep.subr.mxu0 %v416
        %528 = vmatpush1.msra.mxu0 %v415
        %529 = vmatprep.subr.mxu0 %v414
        %530 = vmatpush1.msra.mxu0 %v413
        %531 = vmatprep.subr.mxu0 %v412
        %532 = vmatpush1.msra.mxu0 %v411
        %533 = vmatprep.subr.mxu0 %v410
        %534 = vmatpush1.msra.mxu0 %v409
        %535 = vmatprep.subr.mxu0 %v408
        %536 = vmatpush1.msra.mxu0 %v407
        %537 = vmatprep.subr.mxu0 0.0
        %538 = vmatpush2.msra.mxu0 0.0
        %539 = vmatprep.subr.mxu0 0.0
        %540 = vmatpush2.msra.mxu0 0.0
        %541 = vmatprep.subr.mxu0 0.0
        %542 = vmatpush2.msra.mxu0 0.0
        %543 = vmatprep.subr.mxu0 0.0
        %544 = vmatpush2.msra.mxu0 0.0
        %545 = vmatprep.subr.mxu0 0.0
        %546 = vmatpush2.msra.mxu0 0.0
        %547 = vmatprep.subr.mxu0 0.0
        %548 = vmatpush2.msra.mxu0 0.0
        %549 = vmatprep.subr.mxu0 0.0
        %550 = vmatpush2.msra.mxu0 0.0
        %551 = vmatprep.subr.mxu0 0.0
        %552 = vmatpush2.msra.mxu0 0.0
        %553 = vmatprep.subr.mxu0 0.0
        %554 = vmatpush2.msra.mxu0 0.0
        %555 = vmatprep.subr.mxu0 0.0
        %556 = vmatpush2.msra.mxu0 0.0
        %557 = vmatprep.subr.mxu0 0.0
        %558 = vmatpush2.msra.mxu0 0.0
        %559 = vmatprep.subr.mxu0 0.0
        %560 = vmatpush2.msra.mxu0 0.0
        %561 = vmatprep.subr.mxu0 0.0
        %562 = vmatpush2.msra.mxu0 0.0
        %563 = vmatprep.subr.mxu0 0.0
        %564 = vmatpush2.msra.mxu0 0.0
        %565 = vmatprep.subr.mxu0 0.0
        %566 = vmatpush2.msra.mxu0 0.0
        %567 = vmatprep.subr.mxu0 0.0
        %568 = vmatpush2.msra.mxu0 0.0
        %569 = vmatprep.mubr.f32.mxu0 0.0
        %570 = vmatmul.mubr.f32.gmra.mxu0 %v451
        %v571 = vpop.f32.mrf.mxu0
        %v572 = vadd.f32 %v442, %v571
        %v573 = vpop.f32.mrf.mxu0
        %v574 = vadd.f32 %v446, %v573
        %575 = vmatprep.mubr.f32.mxu0 0.0
        %576 = vmatmul.mubr.f32.gmra.mxu0 %v454
        %v577 = vpop.f32.mrf.mxu0
        %v578 = vadd.f32 %v442, %v577
        %v579 = vpop.f32.mrf.mxu0
        %v580 = vadd.f32 %v446, %v579
        %581 = vmatprep.mubr.f32.mxu0 0.0
        %582 = vmatmul.mubr.f32.gmra.mxu0 %v457
        %v583 = vpop.f32.mrf.mxu0
        %v584 = vadd.f32 %v442, %v583
        %v585 = vpop.f32.mrf.mxu0
        %v586 = vadd.f32 %v446, %v585
        %587 = vmatprep.mubr.f32.mxu0 0.0
        %588 = vmatmul.mubr.f32.gmra.mxu0 %v460
        %v589 = vpop.f32.mrf.mxu0
        %v590 = vadd.f32 %v442, %v589
        %v591 = vpop.f32.mrf.mxu0
        %v592 = vadd.f32 %v446, %v591
        %593 = vmatprep.mubr.f32.mxu0 0.0
        %594 = vmatmul.mubr.f32.gmra.mxu0 %v463
        %v595 = vpop.f32.mrf.mxu0
        %v596 = vadd.f32 %v442, %v595
        %v597 = vpop.f32.mrf.mxu0
        %v598 = vadd.f32 %v446, %v597
        %599 = vmatprep.mubr.f32.mxu0 0.0
        %600 = vmatmul.mubr.f32.gmra.mxu0 %v466
        %v601 = vpop.f32.mrf.mxu0
        %v602 = vadd.f32 %v442, %v601
        %v603 = vpop.f32.mrf.mxu0
        %v604 = vadd.f32 %v446, %v603
        %605 = vmatprep.mubr.f32.mxu0 0.0
        %606 = vmatmul.mubr.f32.gmra.mxu0 %v469
        %v607 = vpop.f32.mrf.mxu0
        %v608 = vadd.f32 %v442, %v607
        %v609 = vpop.f32.mrf.mxu0
        %v610 = vadd.f32 %v446, %v609
        %611 = vmatprep.mubr.f32.mxu0 0.0
        %612 = vmatmul.mubr.f32.gmra.mxu0 %v472
        %v613 = vpop.f32.mrf.mxu0
        %v614 = vadd.f32 %v442, %v613
        %v615 = vpop.f32.mrf.mxu0
        %v616 = vadd.f32 %v446, %v615
        %617 = vmatprep.mubr.f32.mxu0 0.0
        %618 = vmatmul.mubr.f32.gmra.mxu0 %v475
        %v619 = vpop.f32.mrf.mxu0
        %v620 = vadd.f32 %v442, %v619
        %v621 = vpop.f32.mrf.mxu0
        %v622 = vadd.f32 %v446, %v621
        %623 = vmatprep.mubr.f32.mxu0 0.0
        %624 = vmatmul.mubr.f32.gmra.mxu0 %v478
        %v625 = vpop.f32.mrf.mxu0
        %v626 = vadd.f32 %v442, %v625
        %v627 = vpop.f32.mrf.mxu0
        %v628 = vadd.f32 %v446, %v627
        %629 = vmatprep.mubr.f32.mxu0 0.0
        %630 = vmatmul.mubr.f32.gmra.mxu0 %v481
        %v631 = vpop.f32.mrf.mxu0
        %v632 = vadd.f32 %v442, %v631
        %v633 = vpop.f32.mrf.mxu0
        %v634 = vadd.f32 %v446, %v633
        %635 = vmatprep.mubr.f32.mxu0 0.0
        %636 = vmatmul.mubr.f32.gmra.mxu0 %v484
        %v637 = vpop.f32.mrf.mxu0
        %v638 = vadd.f32 %v442, %v637
        %v639 = vpop.f32.mrf.mxu0
        %v640 = vadd.f32 %v446, %v639
        %641 = vmatprep.mubr.f32.mxu0 0.0
        %642 = vmatmul.mubr.f32.gmra.mxu0 %v487
        %v643 = vpop.f32.mrf.mxu0
        %v644 = vadd.f32 %v442, %v643
        %v645 = vpop.f32.mrf.mxu0
        %v646 = vadd.f32 %v446, %v645
        %647 = vmatprep.mubr.f32.mxu0 0.0
        %648 = vmatmul.mubr.f32.gmra.mxu0 %v490
        %v649 = vpop.f32.mrf.mxu0
        %v650 = vadd.f32 %v442, %v649
        %v651 = vpop.f32.mrf.mxu0
        %v652 = vadd.f32 %v446, %v651
        %653 = vmatprep.mubr.f32.mxu0 0.0
        %654 = vmatmul.mubr.f32.gmra.mxu0 %v493
        %v655 = vpop.f32.mrf.mxu0
        %v656 = vadd.f32 %v442, %v655
        %v657 = vpop.f32.mrf.mxu0
        %v658 = vadd.f32 %v446, %v657
        %659 = vmatprep.mubr.f32.mxu0 0.0
        %660 = vmatmul.mubr.f32.gmra.mxu0 %v496
        %v661 = vpop.f32.mrf.mxu0
        %v662 = vadd.f32 %v442, %v661
        %v663 = vpop.f32.mrf.mxu0
        %v664 = vadd.f32 %v446, %v663
        %665 = vdwg.mxu0
        %v666 = vmax.f32 %v572, 0.0
        %v667 = vmax.f32 %v574, 0.0
        %v668 = vmax.f32 %v578, 0.0
        %v669 = vmax.f32 %v580, 0.0
        %v670 = vmax.f32 %v584, 0.0
        %v671 = vmax.f32 %v586, 0.0
        %v672 = vmax.f32 %v590, 0.0
        %v673 = vmax.f32 %v592, 0.0
        %v674 = vmax.f32 %v596, 0.0
        %v675 = vmax.f32 %v598, 0.0
        %v676 = vmax.f32 %v602, 0.0
        %v677 = vmax.f32 %v604, 0.0
        %v678 = vmax.f32 %v608, 0.0
        %v679 = vmax.f32 %v610, 0.0
        %v680 = vmax.f32 %v614, 0.0
        %v681 = vmax.f32 %v616, 0.0
        %v682 = vmax.f32 %v620, 0.0
        %v683 = vmax.f32 %v622, 0.0
        %v684 = vmax.f32 %v626, 0.0
        %v685 = vmax.f32 %v628, 0.0
        %v686 = vmax.f32 %v632, 0.0
        %v687 = vmax.f32 %v634, 0.0
        %v688 = vmax.f32 %v638, 0.0
        %v689 = vmax.f32 %v640, 0.0
        %v690 = vmax.f32 %v644, 0.0
        %v691 = vmax.f32 %v646, 0.0
        %v692 = vmax.f32 %v650, 0.0
        %v693 = vmax.f32 %v652, 0.0
        %v694 = vmax.f32 %v656, 0.0
        %v695 = vmax.f32 %v658, 0.0
        %v696 = vmax.f32 %v662, 0.0
        %v697 = vmax.f32 %v664, 0.0
        %v698 = vld [vmem:[#allocation7] sm:$0xff]
        %v699 = vld [vmem:[#allocation7 + $0x8] sm:$0xff]
        %v700 = vld [vmem:[#allocation7 + $0x10] sm:$0xff]
        %v701 = vld [vmem:[#allocation7 + $0x18] sm:$0xff]
        %v702 = vld [vmem:[#allocation7 + $0x20] sm:$0xff]
        %v703 = vld [vmem:[#allocation7 + $0x28] sm:$0xff]
        %v704 = vld [vmem:[#allocation7 + $0x30] sm:$0xff]
        %v705 = vld [vmem:[#allocation7 + $0x38] sm:$0xff]
        %v706 = vld [vmem:[#allocation7 + $0x40] sm:$0xff]
        %v707 = vld [vmem:[#allocation7 + $0x48] sm:$0xff]
        %v708 = vld [vmem:[#allocation7 + $0x50] sm:$0xff]
        %v709 = vld [vmem:[#allocation7 + $0x58] sm:$0xff]
        %v710 = vld [vmem:[#allocation7 + $0x60] sm:$0xff]
        %v711 = vld [vmem:[#allocation7 + $0x68] sm:$0xff]
        %v712 = vld [vmem:[#allocation7 + $0x70] sm:$0xff]
        %v713 = vld [vmem:[#allocation7 + $0x78] sm:$0xff]
        %v714 = vld [vmem:[#allocation7 + $0x80] sm:$0xff]
        %v715 = vld [vmem:[#allocation7 + $0x88] sm:$0xff]
        %v716 = vld [vmem:[#allocation7 + $0x90] sm:$0xff]
        %v717 = vld [vmem:[#allocation7 + $0x98] sm:$0xff]
        %v718 = vld [vmem:[#allocation7 + $0xa0] sm:$0xff]
        %v719 = vld [vmem:[#allocation7 + $0xa8] sm:$0xff]
        %v720 = vld [vmem:[#allocation7 + $0xb0] sm:$0xff]
        %v721 = vld [vmem:[#allocation7 + $0xb8] sm:$0xff]
        %v722 = vld [vmem:[#allocation7 + $0xc0] sm:$0xff]
        %v723 = vld [vmem:[#allocation7 + $0xc8] sm:$0xff]
        %v724 = vld [vmem:[#allocation7 + $0xd0] sm:$0xff]
        %v725 = vld [vmem:[#allocation7 + $0xd8] sm:$0xff]
        %v726 = vld [vmem:[#allocation7 + $0xe0] sm:$0xff]
        %v727 = vld [vmem:[#allocation7 + $0xe8] sm:$0xff]
        %v728 = vld [vmem:[#allocation7 + $0xf0] sm:$0xff]
        %v729 = vld [vmem:[#allocation7 + $0xf8] sm:$0xff]
        %v730 = vld [vmem:[%s4] sm:$0x1]
        %v732 = vlaneseq
        %v733 = vshrl.u32 %v732, 7
        %v734 = vsub.s32 0, %v733
        %v735 = vrot.slane %v730, %v734
        %737 = vmatprep.subr.mxu0 0.0
        %738 = vmatpush1.msra.mxu0 %v713
        %739 = vmatprep.subr.mxu0 0.0
        %740 = vmatpush1.msra.mxu0 %v712
        %741 = vmatprep.subr.mxu0 0.0
        %742 = vmatpush1.msra.mxu0 %v711
        %743 = vmatprep.subr.mxu0 0.0
        %744 = vmatpush1.msra.mxu0 %v710
        %745 = vmatprep.subr.mxu0 0.0
        %746 = vmatpush1.msra.mxu0 %v709
        %747 = vmatprep.subr.mxu0 0.0
        %748 = vmatpush1.msra.mxu0 %v708
        %749 = vmatprep.subr.mxu0 0.0
        %750 = vmatpush1.msra.mxu0 %v707
        %751 = vmatprep.subr.mxu0 0.0
        %752 = vmatpush1.msra.mxu0 %v706
        %753 = vmatprep.subr.mxu0 0.0
        %754 = vmatpush1.msra.mxu0 %v705
        %755 = vmatprep.subr.mxu0 0.0
        %756 = vmatpush1.msra.mxu0 %v704
        %757 = vmatprep.subr.mxu0 0.0
        %758 = vmatpush1.msra.mxu0 %v703
        %759 = vmatprep.subr.mxu0 0.0
        %760 = vmatpush1.msra.mxu0 %v702
        %761 = vmatprep.subr.mxu0 0.0
        %762 = vmatpush1.msra.mxu0 %v701
        %763 = vmatprep.subr.mxu0 0.0
        %764 = vmatpush1.msra.mxu0 %v700
        %765 = vmatprep.subr.mxu0 0.0
        %766 = vmatpush1.msra.mxu0 %v699
        %767 = vmatprep.subr.mxu0 0.0
        %768 = vmatpush1.msra.mxu0 %v698
        %769 = vmatprep.subr.mxu0 0.0
        %770 = vmatpush2.msra.mxu0 %v729
        %771 = vmatprep.subr.mxu0 0.0
        %772 = vmatpush2.msra.mxu0 %v728
        %773 = vmatprep.subr.mxu0 0.0
        %774 = vmatpush2.msra.mxu0 %v727
        %775 = vmatprep.subr.mxu0 0.0
        %776 = vmatpush2.msra.mxu0 %v726
        %777 = vmatprep.subr.mxu0 0.0
        %778 = vmatpush2.msra.mxu0 %v725
        %779 = vmatprep.subr.mxu0 0.0
        %780 = vmatpush2.msra.mxu0 %v724
        %781 = vmatprep.subr.mxu0 0.0
        %782 = vmatpush2.msra.mxu0 %v723
        %783 = vmatprep.subr.mxu0 0.0
        %784 = vmatpush2.msra.mxu0 %v722
        %785 = vmatprep.subr.mxu0 0.0
        %786 = vmatpush2.msra.mxu0 %v721
        %787 = vmatprep.subr.mxu0 0.0
        %788 = vmatpush2.msra.mxu0 %v720
        %789 = vmatprep.subr.mxu0 0.0
        %790 = vmatpush2.msra.mxu0 %v719
        %791 = vmatprep.subr.mxu0 0.0
        %792 = vmatpush2.msra.mxu0 %v718
        %793 = vmatprep.subr.mxu0 0.0
        %794 = vmatpush2.msra.mxu0 %v717
        %795 = vmatprep.subr.mxu0 0.0
        %796 = vmatpush2.msra.mxu0 %v716
        %797 = vmatprep.subr.mxu0 0.0
        %798 = vmatpush2.msra.mxu0 %v715
        %799 = vmatprep.subr.mxu0 0.0
        %800 = vmatpush2.msra.mxu0 %v714
        %801 = vmatprep.mubr.f32.mxu0 %v667
        %802 = vmatmul.mubr.f32.gmra.mxu0 %v666
        %v803 = vpop.f32.mrf.mxu0
        %v804 = vadd.f32 %v735, %v803
        %v805 = vpop.f32.mrf.mxu0
        %806 = vmatprep.mubr.f32.mxu0 %v669
        %807 = vmatmul.mubr.f32.gmra.mxu0 %v668
        %v808 = vpop.f32.mrf.mxu0
        %v809 = vadd.f32 %v735, %v808
        %v810 = vpop.f32.mrf.mxu0
        %811 = vmatprep.mubr.f32.mxu0 %v671
        %812 = vmatmul.mubr.f32.gmra.mxu0 %v670
        %v813 = vpop.f32.mrf.mxu0
        %v814 = vadd.f32 %v735, %v813
        %v815 = vpop.f32.mrf.mxu0
        %816 = vmatprep.mubr.f32.mxu0 %v673
        %817 = vmatmul.mubr.f32.gmra.mxu0 %v672
        %v818 = vpop.f32.mrf.mxu0
        %v819 = vadd.f32 %v735, %v818
        %v820 = vpop.f32.mrf.mxu0
        %821 = vmatprep.mubr.f32.mxu0 %v675
        %822 = vmatmul.mubr.f32.gmra.mxu0 %v674
        %v823 = vpop.f32.mrf.mxu0
        %v824 = vadd.f32 %v735, %v823
        %v825 = vpop.f32.mrf.mxu0
        %826 = vmatprep.mubr.f32.mxu0 %v677
        %827 = vmatmul.mubr.f32.gmra.mxu0 %v676
        %v828 = vpop.f32.mrf.mxu0
        %v829 = vadd.f32 %v735, %v828
        %v830 = vpop.f32.mrf.mxu0
        %831 = vmatprep.mubr.f32.mxu0 %v679
        %832 = vmatmul.mubr.f32.gmra.mxu0 %v678
        %v833 = vpop.f32.mrf.mxu0
        %v834 = vadd.f32 %v735, %v833
        %v835 = vpop.f32.mrf.mxu0
        %836 = vmatprep.mubr.f32.mxu0 %v681
        %837 = vmatmul.mubr.f32.gmra.mxu0 %v680
        %v838 = vpop.f32.mrf.mxu0
        %v839 = vadd.f32 %v735, %v838
        %v840 = vpop.f32.mrf.mxu0
        %841 = vmatprep.mubr.f32.mxu0 %v683
        %842 = vmatmul.mubr.f32.gmra.mxu0 %v682
        %v843 = vpop.f32.mrf.mxu0
        %v844 = vadd.f32 %v735, %v843
        %v845 = vpop.f32.mrf.mxu0
        %846 = vmatprep.mubr.f32.mxu0 %v685
        %847 = vmatmul.mubr.f32.gmra.mxu0 %v684
        %v848 = vpop.f32.mrf.mxu0
        %v849 = vadd.f32 %v735, %v848
        %v850 = vpop.f32.mrf.mxu0
        %851 = vmatprep.mubr.f32.mxu0 %v687
        %852 = vmatmul.mubr.f32.gmra.mxu0 %v686
        %v853 = vpop.f32.mrf.mxu0
        %v854 = vadd.f32 %v735, %v853
        %v855 = vpop.f32.mrf.mxu0
        %856 = vmatprep.mubr.f32.mxu0 %v689
        %857 = vmatmul.mubr.f32.gmra.mxu0 %v688
        %v858 = vpop.f32.mrf.mxu0
        %v859 = vadd.f32 %v735, %v858
        %v860 = vpop.f32.mrf.mxu0
        %861 = vmatprep.mubr.f32.mxu0 %v691
        %862 = vmatmul.mubr.f32.gmra.mxu0 %v690
        %v863 = vpop.f32.mrf.mxu0
        %v864 = vadd.f32 %v735, %v863
        %v865 = vpop.f32.mrf.mxu0
        %866 = vmatprep.mubr.f32.mxu0 %v693
        %867 = vmatmul.mubr.f32.gmra.mxu0 %v692
        %v868 = vpop.f32.mrf.mxu0
        %v869 = vadd.f32 %v735, %v868
        %v870 = vpop.f32.mrf.mxu0
        %871 = vmatprep.mubr.f32.mxu0 %v695
        %872 = vmatmul.mubr.f32.gmra.mxu0 %v694
        %v873 = vpop.f32.mrf.mxu0
        %v874 = vadd.f32 %v735, %v873
        %v875 = vpop.f32.mrf.mxu0
        %876 = vmatprep.mubr.f32.mxu0 %v697
        %877 = vmatmul.mubr.f32.gmra.mxu0 %v696
        %v878 = vpop.f32.mrf.mxu0
        %v879 = vadd.f32 %v735, %v878
        %v880 = vpop.f32.mrf.mxu0
        %881 = vdwg.mxu0
        %v882 = vmax.f32 %v804, 0.0
        %v883 = vmax.f32 %v809, 0.0
        %v884 = vmax.f32 %v814, 0.0
        %v885 = vmax.f32 %v819, 0.0
        %v886 = vmax.f32 %v824, 0.0
        %v887 = vmax.f32 %v829, 0.0
        %v888 = vmax.f32 %v834, 0.0
        %v889 = vmax.f32 %v839, 0.0
        %v890 = vmax.f32 %v844, 0.0
        %v891 = vmax.f32 %v849, 0.0
        %v892 = vmax.f32 %v854, 0.0
        %v893 = vmax.f32 %v859, 0.0
        %v894 = vmax.f32 %v864, 0.0
        %v895 = vmax.f32 %v869, 0.0
        %v896 = vmax.f32 %v874, 0.0
        %v897 = vmax.f32 %v879, 0.0
        %v898 = vld [vmem:[%s5] sm:$0xff]
        %v899 = vld [vmem:[%s5 + $0x8] sm:$0xff]
        %v900 = vld [vmem:[%s5 + $0x10] sm:$0xff]
        %v901 = vld [vmem:[%s5 + $0x18] sm:$0xff]
        %v902 = vld [vmem:[%s5 + $0x20] sm:$0xff]
        %v903 = vld [vmem:[%s5 + $0x28] sm:$0xff]
        %v904 = vld [vmem:[%s5 + $0x30] sm:$0xff]
        %v905 = vld [vmem:[%s5 + $0x38] sm:$0xff]
        %v906 = vld [vmem:[%s5 + $0x40] sm:$0xff]
        %v907 = vld [vmem:[%s5 + $0x48] sm:$0xff]
        %v908 = vld [vmem:[%s5 + $0x50] sm:$0xff]
        %v909 = vld [vmem:[%s5 + $0x58] sm:$0xff]
        %v910 = vld [vmem:[%s5 + $0x60] sm:$0xff]
        %v911 = vld [vmem:[%s5 + $0x68] sm:$0xff]
        %v912 = vld [vmem:[%s5 + $0x70] sm:$0xff]
        %v913 = vld [vmem:[%s5 + $0x78] sm:$0xff]
        %v914 = vld [vmem:[%s6] sm:$0x1]
        %v916 = vlaneseq
        %v917 = vshrl.u32 %v916, 7
        %v918 = vsub.s32 0, %v917
        %v919 = vrot.slane %v914, %v918
        %921 = vmatprep.subr.mxu0 0.0
        %922 = vmatpush1.msra.mxu0 %v913
        %923 = vmatprep.subr.mxu0 0.0
        %924 = vmatpush1.msra.mxu0 %v912
        %925 = vmatprep.subr.mxu0 0.0
        %926 = vmatpush1.msra.mxu0 %v911
        %927 = vmatprep.subr.mxu0 0.0
        %928 = vmatpush1.msra.mxu0 %v910
        %929 = vmatprep.subr.mxu0 0.0
        %930 = vmatpush1.msra.mxu0 %v909
        %931 = vmatprep.subr.mxu0 0.0
        %932 = vmatpush1.msra.mxu0 %v908
        %933 = vmatprep.subr.mxu0 0.0
        %934 = vmatpush1.msra.mxu0 %v907
        %935 = vmatprep.subr.mxu0 0.0
        %936 = vmatpush1.msra.mxu0 %v906
        %937 = vmatprep.subr.mxu0 0.0
        %938 = vmatpush1.msra.mxu0 %v905
        %939 = vmatprep.subr.mxu0 0.0
        %940 = vmatpush1.msra.mxu0 %v904
        %941 = vmatprep.subr.mxu0 0.0
        %942 = vmatpush1.msra.mxu0 %v903
        %943 = vmatprep.subr.mxu0 0.0
        %944 = vmatpush1.msra.mxu0 %v902
        %945 = vmatprep.subr.mxu0 0.0
        %946 = vmatpush1.msra.mxu0 %v901
        %947 = vmatprep.subr.mxu0 0.0
        %948 = vmatpush1.msra.mxu0 %v900
        %949 = vmatprep.subr.mxu0 0.0
        %950 = vmatpush1.msra.mxu0 %v899
        %951 = vmatprep.subr.mxu0 0.0
        %952 = vmatpush1.msra.mxu0 %v898
        %953 = vmatprep.subr.mxu0 0.0
        %954 = vmatpush2.msra.mxu0 0.0
        %955 = vmatprep.subr.mxu0 0.0
        %956 = vmatpush2.msra.mxu0 0.0
        %957 = vmatprep.subr.mxu0 0.0
        %958 = vmatpush2.msra.mxu0 0.0
        %959 = vmatprep.subr.mxu0 0.0
        %960 = vmatpush2.msra.mxu0 0.0
        %961 = vmatprep.subr.mxu0 0.0
        %962 = vmatpush2.msra.mxu0 0.0
        %963 = vmatprep.subr.mxu0 0.0
        %964 = vmatpush2.msra.mxu0 0.0
        %965 = vmatprep.subr.mxu0 0.0
        %966 = vmatpush2.msra.mxu0 0.0
        %967 = vmatprep.subr.mxu0 0.0
        %968 = vmatpush2.msra.mxu0 0.0
        %969 = vmatprep.subr.mxu0 0.0
        %970 = vmatpush2.msra.mxu0 0.0
        %971 = vmatprep.subr.mxu0 0.0
        %972 = vmatpush2.msra.mxu0 0.0
        %973 = vmatprep.subr.mxu0 0.0
        %974 = vmatpush2.msra.mxu0 0.0
        %975 = vmatprep.subr.mxu0 0.0
        %976 = vmatpush2.msra.mxu0 0.0
        %977 = vmatprep.subr.mxu0 0.0
        %978 = vmatpush2.msra.mxu0 0.0
        %979 = vmatprep.subr.mxu0 0.0
        %980 = vmatpush2.msra.mxu0 0.0
        %981 = vmatprep.subr.mxu0 0.0
        %982 = vmatpush2.msra.mxu0 0.0
        %983 = vmatprep.subr.mxu0 0.0
        %984 = vmatpush2.msra.mxu0 0.0
        %985 = vmatprep.mubr.f32.mxu0 0.0
        %986 = vmatmul.mubr.f32.gmra.mxu0 %v882
        %v987 = vpop.f32.mrf.mxu0
        %v988 = vadd.f32 %v919, %v987
        %v989 = vpop.f32.mrf.mxu0
        %990 = vmatprep.mubr.f32.mxu0 0.0
        %991 = vmatmul.mubr.f32.gmra.mxu0 %v883
        %v992 = vpop.f32.mrf.mxu0
        %v993 = vadd.f32 %v919, %v992
        %v994 = vpop.f32.mrf.mxu0
        %995 = vmatprep.mubr.f32.mxu0 0.0
        %996 = vmatmul.mubr.f32.gmra.mxu0 %v884
        %v997 = vpop.f32.mrf.mxu0
        %v998 = vadd.f32 %v919, %v997
        %v999 = vpop.f32.mrf.mxu0
        %1000 = vmatprep.mubr.f32.mxu0 0.0
        %1001 = vmatmul.mubr.f32.gmra.mxu0 %v885
        %v1002 = vpop.f32.mrf.mxu0
        %v1003 = vadd.f32 %v919, %v1002
        %v1004 = vpop.f32.mrf.mxu0
        %1005 = vmatprep.mubr.f32.mxu0 0.0
        %1006 = vmatmul.mubr.f32.gmra.mxu0 %v886
        %v1007 = vpop.f32.mrf.mxu0
        %v1008 = vadd.f32 %v919, %v1007
        %v1009 = vpop.f32.mrf.mxu0
        %1010 = vmatprep.mubr.f32.mxu0 0.0
        %1011 = vmatmul.mubr.f32.gmra.mxu0 %v887
        %v1012 = vpop.f32.mrf.mxu0
        %v1013 = vadd.f32 %v919, %v1012
        %v1014 = vpop.f32.mrf.mxu0
        %1015 = vmatprep.mubr.f32.mxu0 0.0
        %1016 = vmatmul.mubr.f32.gmra.mxu0 %v888
        %v1017 = vpop.f32.mrf.mxu0
        %v1018 = vadd.f32 %v919, %v1017
        %v1019 = vpop.f32.mrf.mxu0
        %1020 = vmatprep.mubr.f32.mxu0 0.0
        %1021 = vmatmul.mubr.f32.gmra.mxu0 %v889
        %v1022 = vpop.f32.mrf.mxu0
        %v1023 = vadd.f32 %v919, %v1022
        %v1024 = vpop.f32.mrf.mxu0
        %1025 = vmatprep.mubr.f32.mxu0 0.0
        %1026 = vmatmul.mubr.f32.gmra.mxu0 %v890
        %v1027 = vpop.f32.mrf.mxu0
        %v1028 = vadd.f32 %v919, %v1027
        %v1029 = vpop.f32.mrf.mxu0
        %1030 = vmatprep.mubr.f32.mxu0 0.0
        %1031 = vmatmul.mubr.f32.gmra.mxu0 %v891
        %v1032 = vpop.f32.mrf.mxu0
        %v1033 = vadd.f32 %v919, %v1032
        %v1034 = vpop.f32.mrf.mxu0
        %1035 = vmatprep.mubr.f32.mxu0 0.0
        %1036 = vmatmul.mubr.f32.gmra.mxu0 %v892
        %v1037 = vpop.f32.mrf.mxu0
        %v1038 = vadd.f32 %v919, %v1037
        %v1039 = vpop.f32.mrf.mxu0
        %1040 = vmatprep.mubr.f32.mxu0 0.0
        %1041 = vmatmul.mubr.f32.gmra.mxu0 %v893
        %v1042 = vpop.f32.mrf.mxu0
        %v1043 = vadd.f32 %v919, %v1042
        %v1044 = vpop.f32.mrf.mxu0
        %1045 = vmatprep.mubr.f32.mxu0 0.0
        %1046 = vmatmul.mubr.f32.gmra.mxu0 %v894
        %v1047 = vpop.f32.mrf.mxu0
        %v1048 = vadd.f32 %v919, %v1047
        %v1049 = vpop.f32.mrf.mxu0
        %1050 = vmatprep.mubr.f32.mxu0 0.0
        %1051 = vmatmul.mubr.f32.gmra.mxu0 %v895
        %v1052 = vpop.f32.mrf.mxu0
        %v1053 = vadd.f32 %v919, %v1052
        %v1054 = vpop.f32.mrf.mxu0
        %1055 = vmatprep.mubr.f32.mxu0 0.0
        %1056 = vmatmul.mubr.f32.gmra.mxu0 %v896
        %v1057 = vpop.f32.mrf.mxu0
        %v1058 = vadd.f32 %v919, %v1057
        %v1059 = vpop.f32.mrf.mxu0
        %1060 = vmatprep.mubr.f32.mxu0 0.0
        %1061 = vmatmul.mubr.f32.gmra.mxu0 %v897
        %v1062 = vpop.f32.mrf.mxu0
        %v1063 = vadd.f32 %v919, %v1062
        %v1064 = vpop.f32.mrf.mxu0
        %1065 = vdwg.mxu0
        %v1066 = vmax.f32 %v988, 0.0
        %v1067 = vmax.f32 %v993, 0.0
        %v1068 = vmax.f32 %v998, 0.0
        %v1069 = vmax.f32 %v1003, 0.0
        %v1070 = vmax.f32 %v1008, 0.0
        %v1071 = vmax.f32 %v1013, 0.0
        %v1072 = vmax.f32 %v1018, 0.0
        %v1073 = vmax.f32 %v1023, 0.0
        %v1074 = vmax.f32 %v1028, 0.0
        %v1075 = vmax.f32 %v1033, 0.0
        %v1076 = vmax.f32 %v1038, 0.0
        %v1077 = vmax.f32 %v1043, 0.0
        %v1078 = vmax.f32 %v1048, 0.0
        %v1079 = vmax.f32 %v1053, 0.0
        %v1080 = vmax.f32 %v1058, 0.0
        %v1081 = vmax.f32 %v1063, 0.0
        %v1082 = vld [vmem:[%s7] sm:$0x1]
        %v1084 = vlaneseq
        %v1085 = vshrl.u32 %v1084, 7
        %v1086 = vsub.s32 0, %v1085
        %v1087 = vrot.slane %v1082, %v1086
        %v1089 = vmul.f32 %v1066, %v1087
        %v1090 = vmul.f32 %v1067, %v1087
        %v1091 = vmul.f32 %v1068, %v1087
        %v1092 = vmul.f32 %v1069, %v1087
        %v1093 = vmul.f32 %v1070, %v1087
        %v1094 = vmul.f32 %v1071, %v1087
        %v1095 = vmul.f32 %v1072, %v1087
        %v1096 = vmul.f32 %v1073, %v1087
        %v1097 = vmul.f32 %v1074, %v1087
        %v1098 = vmul.f32 %v1075, %v1087
        %v1099 = vmul.f32 %v1076, %v1087
        %v1100 = vmul.f32 %v1077, %v1087
        %v1101 = vmul.f32 %v1078, %v1087
        %v1102 = vmul.f32 %v1079, %v1087
        %v1103 = vmul.f32 %v1080, %v1087
        %v1104 = vmul.f32 %v1081, %v1087
        %vm1105 = vcmask 523264
        %v1106 = vsel %vm1105, %v1089, 0.0
        %1107 = vadd.xlane.f32.xlu0 %v1106
        %v1108 = vpop.xlane.xlu0 %1107
        %v1109 = vsel %vm1105, %v1090, 0.0
        %1110 = vadd.xlane.f32.xlu0 %v1109
        %v1111 = vpop.xlane.xlu0 %1110
        %v1112 = vsel %vm1105, %v1091, 0.0
        %1113 = vadd.xlane.f32.xlu0 %v1112
        %v1114 = vpop.xlane.xlu0 %1113
        %v1115 = vsel %vm1105, %v1092, 0.0
        %1116 = vadd.xlane.f32.xlu0 %v1115
        %v1117 = vpop.xlane.xlu0 %1116
        %v1118 = vsel %vm1105, %v1093, 0.0
        %1119 = vadd.xlane.f32.xlu0 %v1118
        %v1120 = vpop.xlane.xlu0 %1119
        %v1121 = vsel %vm1105, %v1094, 0.0
        %1122 = vadd.xlane.f32.xlu0 %v1121
        %v1123 = vpop.xlane.xlu0 %1122
        %v1124 = vsel %vm1105, %v1095, 0.0
        %1125 = vadd.xlane.f32.xlu0 %v1124
        %v1126 = vpop.xlane.xlu0 %1125
        %v1127 = vsel %vm1105, %v1096, 0.0
        %1128 = vadd.xlane.f32.xlu0 %v1127
        %v1129 = vpop.xlane.xlu0 %1128
        %v1130 = vsel %vm1105, %v1097, 0.0
        %1131 = vadd.xlane.f32.xlu0 %v1130
        %v1132 = vpop.xlane.xlu0 %1131
        %v1133 = vsel %vm1105, %v1098, 0.0
        %1134 = vadd.xlane.f32.xlu0 %v1133
        %v1135 = vpop.xlane.xlu0 %1134
        %v1136 = vsel %vm1105, %v1099, 0.0
        %1137 = vadd.xlane.f32.xlu0 %v1136
        %v1138 = vpop.xlane.xlu0 %1137
        %v1139 = vsel %vm1105, %v1100, 0.0
        %1140 = vadd.xlane.f32.xlu0 %v1139
        %v1141 = vpop.xlane.xlu0 %1140
        %v1142 = vsel %vm1105, %v1101, 0.0
        %1143 = vadd.xlane.f32.xlu0 %v1142
        %v1144 = vpop.xlane.xlu0 %1143
        %v1145 = vsel %vm1105, %v1102, 0.0
        %1146 = vadd.xlane.f32.xlu0 %v1145
        %v1147 = vpop.xlane.xlu0 %1146
        %v1148 = vsel %vm1105, %v1103, 0.0
        %1149 = vadd.xlane.f32.xlu0 %v1148
        %v1150 = vpop.xlane.xlu0 %1149
        %v1151 = vsel %vm1105, %v1104, 0.0
        %1152 = vadd.xlane.f32.xlu0 %v1151
        %v1153 = vpop.xlane.xlu0 %1152
        %v1154 = vld [vmem:[#allocation2] sm:$0x1]
        %1156 = vset.pattern.permute.xlu0 0
        %1157 = vperm.xlu0 %1156, %v1154
        %v1158 = vpop.permute.xlu0 %1157
        %v1160 = vlaneseq
        %v1161 = vshrl.u32 %v1160, 7
        %v1162 = vsub.s32 0, %v1161
        %v1163 = vrot.slane %v1158, %v1162
        %v1164 = vadd.f32 %v1108, %v1163
        %v1165 = vadd.f32 %v1111, %v1163
        %v1166 = vadd.f32 %v1114, %v1163
        %v1167 = vadd.f32 %v1117, %v1163
        %v1168 = vadd.f32 %v1120, %v1163
        %v1169 = vadd.f32 %v1123, %v1163
        %v1170 = vadd.f32 %v1126, %v1163
        %v1171 = vadd.f32 %v1129, %v1163
        %v1172 = vadd.f32 %v1132, %v1163
        %v1173 = vadd.f32 %v1135, %v1163
        %v1174 = vadd.f32 %v1138, %v1163
        %v1175 = vadd.f32 %v1141, %v1163
        %v1176 = vadd.f32 %v1144, %v1163
        %v1177 = vadd.f32 %v1147, %v1163
        %v1178 = vadd.f32 %v1150, %v1163
        %v1179 = vadd.f32 %v1153, %v1163
        %v1196 = vlaneseq
        %v1197 = vand.u32 %v1196, 127
        %v1198 = vlaneseq
        %v1199 = vshrl.u32 %v1198, 7
        %v1200 = vsub.s32 %v1197, %v1199
        %v1201 = vrot.slane %v1164, %v1200
        %v1202 = vadd.s32 %v1197, 4294967288
        %v1203 = vlaneseq
        %v1204 = vshrl.u32 %v1203, 7
        %v1205 = vsub.s32 %v1202, %v1204
        %v1206 = vrot.slane %v1165, %v1205
        %vm1207 = vcmask 130112
        %v1208 = vsel %vm1207, %v1206, %v1201
        %v1209 = vadd.s32 %v1197, 4294967280
        %v1210 = vlaneseq
        %v1211 = vshrl.u32 %v1210, 7
        %v1212 = vsub.s32 %v1209, %v1211
        %v1213 = vrot.slane %v1166, %v1212
        %vm1214 = vcmask 195712
        %v1215 = vsel %vm1214, %v1213, %v1208
        %v1216 = vadd.s32 %v1197, 4294967272
        %v1217 = vlaneseq
        %v1218 = vshrl.u32 %v1217, 7
        %v1219 = vsub.s32 %v1216, %v1218
        %v1220 = vrot.slane %v1167, %v1219
        %vm1221 = vcmask 261312
        %v1222 = vsel %vm1221, %v1220, %v1215
        %v1223 = vadd.s32 %v1197, 4294967264
        %v1224 = vlaneseq
        %v1225 = vshrl.u32 %v1224, 7
        %v1226 = vsub.s32 %v1223, %v1225
        %v1227 = vrot.slane %v1168, %v1226
        %vm1228 = vcmask 326912
        %v1229 = vsel %vm1228, %v1227, %v1222
        %v1230 = vadd.s32 %v1197, 4294967256
        %v1231 = vlaneseq
        %v1232 = vshrl.u32 %v1231, 7
        %v1233 = vsub.s32 %v1230, %v1232
        %v1234 = vrot.slane %v1169, %v1233
        %vm1235 = vcmask 392512
        %v1236 = vsel %vm1235, %v1234, %v1229
        %v1237 = vadd.s32 %v1197, 4294967248
        %v1238 = vlaneseq
        %v1239 = vshrl.u32 %v1238, 7
        %v1240 = vsub.s32 %v1237, %v1239
        %v1241 = vrot.slane %v1170, %v1240
        %vm1242 = vcmask 458112
        %v1243 = vsel %vm1242, %v1241, %v1236
        %v1244 = vadd.s32 %v1197, 4294967240
        %v1245 = vlaneseq
        %v1246 = vshrl.u32 %v1245, 7
        %v1247 = vsub.s32 %v1244, %v1246
        %v1248 = vrot.slane %v1171, %v1247
        %vm1249 = vcmask 523712
        %v1250 = vsel %vm1249, %v1248, %v1243
        %v1251 = vadd.s32 %v1197, 4294967232
        %v1252 = vlaneseq
        %v1253 = vshrl.u32 %v1252, 7
        %v1254 = vsub.s32 %v1251, %v1253
        %v1255 = vrot.slane %v1172, %v1254
        %vm1256 = vcmask 589312
        %v1257 = vsel %vm1256, %v1255, %v1250
        %v1258 = vadd.s32 %v1197, 4294967224
        %v1259 = vlaneseq
        %v1260 = vshrl.u32 %v1259, 7
        %v1261 = vsub.s32 %v1258, %v1260
        %v1262 = vrot.slane %v1173, %v1261
        %vm1263 = vcmask 654912
        %v1264 = vsel %vm1263, %v1262, %v1257
        %v1265 = vadd.s32 %v1197, 4294967216
        %v1266 = vlaneseq
        %v1267 = vshrl.u32 %v1266, 7
        %v1268 = vsub.s32 %v1265, %v1267
        %v1269 = vrot.slane %v1174, %v1268
        %vm1270 = vcmask 720512
        %v1271 = vsel %vm1270, %v1269, %v1264
        %v1272 = vadd.s32 %v1197, 4294967208
        %v1273 = vlaneseq
        %v1274 = vshrl.u32 %v1273, 7
        %v1275 = vsub.s32 %v1272, %v1274
        %v1276 = vrot.slane %v1175, %v1275
        %vm1277 = vcmask 786112
        %v1278 = vsel %vm1277, %v1276, %v1271
        %v1279 = vadd.s32 %v1197, 4294967200
        %v1280 = vlaneseq
        %v1281 = vshrl.u32 %v1280, 7
        %v1282 = vsub.s32 %v1279, %v1281
        %v1283 = vrot.slane %v1176, %v1282
        %vm1284 = vcmask 851712
        %v1285 = vsel %vm1284, %v1283, %v1278
        %v1286 = vadd.s32 %v1197, 4294967192
        %v1287 = vlaneseq
        %v1288 = vshrl.u32 %v1287, 7
        %v1289 = vsub.s32 %v1286, %v1288
        %v1290 = vrot.slane %v1177, %v1289
        %vm1291 = vcmask 917312
        %v1292 = vsel %vm1291, %v1290, %v1285
        %v1293 = vadd.s32 %v1197, 4294967184
        %v1294 = vlaneseq
        %v1295 = vshrl.u32 %v1294, 7
        %v1296 = vsub.s32 %v1293, %v1295
        %v1297 = vrot.slane %v1178, %v1296
        %vm1298 = vcmask 982912
        %v1299 = vsel %vm1298, %v1297, %v1292
        %v1300 = vadd.s32 %v1197, 4294967176
        %v1301 = vlaneseq
        %v1302 = vshrl.u32 %v1301, 7
        %v1303 = vsub.s32 %v1300, %v1302
        %v1304 = vrot.slane %v1179, %v1303
        %vm1305 = vcmask 1048512
        %v1306 = vsel %vm1305, %v1304, %v1299
        %1308 = vst [vmem:[%s390] sm:$0x1] %v1306
        %p1309 = scmp.lt.s32.totalorder %s26, 2
        %s1310 = scalar_select %p1309, %s26, 2
        %s1311 = scalar_lea.vmem %s9, %s1310
        // Predicated region
        $region69: #{bike_sharing_fcnet_forward.1} parent=55 // pred_check
          %p1312 = pneg %p238
        $region70: #{bike_sharing_fcnet_forward.1} parent=55 // pred_check_branch
          %1314 = sbr.rel (%p1312) target = $region72
        $region71: #{bike_sharing_fcnet_forward.1} parent=55 // pred_region
          _
        $region72: #{bike_sharing_fcnet_forward.1} parent=55 // pred_fallthru
          _
      $region56: #{bike_sharing_fcnet_forward.1} parent=5 // pred_fallthru
        _
      %p1315 = scmp.le.s32.totalorder 2, %s21
      // Predicated region
      $region73: #{bike_sharing_fcnet_forward.1} parent=5 // pred_check
        %p1316 = pneg %p1315
      $region74: #{bike_sharing_fcnet_forward.1} parent=5 // pred_check_branch
        %1318 = sbr.rel (%p1316) target = $region76
      $region75: #{bike_sharing_fcnet_forward.1} parent=5 // pred_region
        %s1319 = ssub.s32 %s21, 2
        // Predicated region
        $region77: #{bike_sharing_fcnet_forward.1} parent=75 // pred_check
          %p1320 = pneg %p244
        $region78: #{bike_sharing_fcnet_forward.1} parent=75 // pred_check_branch
          %1322 = sbr.rel (%p1320) target = $region80
        $region79: #{bike_sharing_fcnet_forward.1} parent=75 // pred_region
          %p1323 = scmp.lt.s32.totalorder %s27, 2
          %s1324 = scalar_select %p1323, %s27, 2
          %s1325 = scalar_lea.vmem %s9, %s1324
        $region80: #{bike_sharing_fcnet_forward.1} parent=75 // pred_fallthru
          _
      $region76: #{bike_sharing_fcnet_forward.1} parent=5 // pred_fallthru
        _
    $region6: #{bike_sharing_fcnet_forward.1} parent=1 // loop_footer
      %s25 = sadd.s32 1, %s21
    $region7: #{bike_sharing_fcnet_forward.1} parent=1 // loop_footer_branch
      %20 = sbr.rel target = $region3
    $region8: #{bike_sharing_fcnet_forward.1} parent=1 // loop_exit
      _
    %1326 = vsyncpa [#allocation4], 1
    %s1327 = scalar_lea.sflag [#allocation4], 1
    %1328 = vsyncpa %s1327, 1
    %1329 = vsyncpa [#allocation6], 1

</llo_original>
